<compile_context>
chip_gen: v7x
topology: tpu7x:2x2x1
jax: 0.10.0
libtpu: 0.0.40
codegen_flags: <defaults>
</compile_context>

<pallas_src>
import functools

import jax
import jax.numpy as jnp
from jax.experimental import pallas as pl
from jax.experimental.pallas import tpu as pltpu

_LANE = 128


# ---------------------------------------------------------------------------
# Pallas kernels.
# ---------------------------------------------------------------------------

def _leaky_relu(x, slope=0.01):
    return jnp.where(x > 0, x, slope * x)


def gnn_weight_kernel(ax_ref, p_ref, w1_ref, b1_ref, w2_ref, b2_ref, ws_ref,
                      o_ref, *, alpha, std_kaiming):
    """One-shot (construction-time) kernel producing the effective first-layer
    weight.

    ax_ref : (nf*npg, c)   precomputed A_hat @ Xn (block-diag aggregation)
    p_ref  : (nf, nf*npg)  pooling matrix (2nd GCN aggregation + mean pool)
    Output : (nf, embed)   alpha * scale(W_gnn) + (1-alpha) * W_scratch
    """
    # GCN layer 1:  H1 = relu((A X) W1 + b1)
    h1 = jnp.dot(ax_ref[...], w1_ref[...],
                 preferred_element_type=jnp.float32) + b1_ref[...]
    h1 = jnp.maximum(h1, 0.0)

    # GCN layer 2 + per-graph mean pooling, collapsed into P @ H1 @ W2 + b2.
    pooled = jnp.dot(p_ref[...], h1, preferred_element_type=jnp.float32)
    wg = jnp.dot(pooled, w2_ref[...],
                 preferred_element_type=jnp.float32) + b2_ref[...]

    # Rescale W_gnn to the kaiming-normal std (unbiased std, ddof=1, to match
    # torch.std), then interpolate with the kaiming scratch weights.
    n_elem = wg.shape[0] * wg.shape[1]
    mean = jnp.sum(wg) / n_elem
    var = jnp.sum((wg - mean) ** 2) / (n_elem - 1)
    std = jnp.sqrt(var)
    wg = wg * (std_kaiming / (std + 1e-8))

    o_ref[...] = alpha * wg + (1.0 - alpha) * ws_ref[...]


def fused_mlp_kernel(x_ref, wf_ref, wrest_ref, b_ref, o_ref, *, num_rest):
    """Per-batch-tile forward: first layer -> hidden layers -> head.

    x_ref     : (TILE_B, nf)            f32  input tile (streamed per grid step)
    wf_ref    : (nf, 128)               bf16 first-layer weight, lane-padded
    wrest_ref : (num_rest, 128, 128)    bf16 stacked hidden + head weights,
                                             each zero-padded into a 128x128 slot
    b_ref     : (num_rest + 1, 1, 128)  f32  stacked biases, lane-padded
    o_ref     : (TILE_B, 128)           f32  lane-dense logits slab
    """
    x = x_ref[...].astype(jnp.bfloat16)           # bf16 MXU operands
    h = jnp.dot(x, wf_ref[...], preferred_element_type=jnp.float32)
    h = _leaky_relu(h + b_ref[0])                 # f32 elementwise (v5e-safe)

    for i in range(num_rest):                     # static unroll
        h = jnp.dot(h.astype(jnp.bfloat16), wrest_ref[i],
                    preferred_element_type=jnp.float32)
        h = h + b_ref[i + 1]
        if i < num_rest - 1:                      # no activation on the head
            h = _leaky_relu(h)

    o_ref[...] = h                                # unmasked, lane-dense store


# ---------------------------------------------------------------------------
# pallas_call glue.
# ---------------------------------------------------------------------------

_VMEM_SPEC = pl.BlockSpec(memory_space=pltpu.MemorySpace.VMEM)


def _run_gridless(kernel, out_shape, *args):
    """Gridless, fully VMEM-resident call (construction-time only)."""
    return pl.pallas_call(
        kernel,
        in_specs=[_VMEM_SPEC] * len(args),
        out_specs=_VMEM_SPEC,
        out_shape=jax.ShapeDtypeStruct(out_shape, jnp.float32),
    )(*args)


def _ceil_to(n, m):
    return ((n + m - 1) // m) * m


# ---------------------------------------------------------------------------
# GCondNet (JAX / Pallas version) with deterministic synthetic parameters.
# ---------------------------------------------------------------------------

class GCondNetPallas:
    def __init__(self, key, *, num_features=16, nodes_per_graph=8,
                 node_in_channels=4, gnn_hidden=64, embed_dim=32,
                 hidden_dims=(16,), num_classes=2, alpha=0.5, tile_b=128):
        self.num_features = num_features
        self.embed_dim = embed_dim
        self.num_classes = num_classes
        self.alpha = float(alpha)
        self.tile_b = int(tile_b)
        # std of kaiming_normal_ on a (embed_dim, num_features) Linear weight.
        self.std_kaiming = float(jnp.sqrt(2.0 / num_features))

        ks = jax.random.split(key, 12)

        # ---- fixed "graphs_dataset_all": one ring graph per input feature ---
        n = nodes_per_graph
        idx = jnp.arange(n)
        adj = jnp.zeros((n, n), jnp.float32)
        adj = adj.at[idx, (idx + 1) % n].set(1.0)
        adj = adj.at[(idx + 1) % n, idx].set(1.0)
        adj = adj + jnp.eye(n, dtype=jnp.float32)             # self loops
        deg = adj.sum(axis=1)
        dinv = 1.0 / jnp.sqrt(deg)
        a_hat = adj * dinv[:, None] * dinv[None, :]           # sym. normalized

        # Fixed node features (constant graph data).
        Xn = 0.1 * jax.random.normal(
            ks[0], (num_features * n, node_in_channels), jnp.float32)

        # Precompute (block-diag A_hat) @ Xn without materializing the
        # (nf*npg)^2 block-diagonal matrix: per-graph a_hat @ Xn_g.
        AX = jnp.einsum('ij,gjc->gic', a_hat,
                        Xn.reshape(num_features, n, node_in_channels))
        AX = AX.reshape(num_features * n, node_in_channels)

        # Pooling matrix folding the 2nd GCN aggregation + per-graph mean pool.
        w_pool = a_hat.mean(axis=0)                           # (npg,)
        P = jnp.kron(jnp.eye(num_features, dtype=jnp.float32),
                     w_pool[None, :])                         # (nf, nf*npg)

        # ---- GCN encoder params -------------------------------------------
        W_gcn1 = 0.2 * jax.random.normal(ks[1], (node_in_channels, gnn_hidden))
        b_gcn1 = jnp.zeros((1, gnn_hidden), jnp.float32)
        W_gcn2 = 0.2 * jax.random.normal(ks[2], (gnn_hidden, embed_dim))
        b_gcn2 = jnp.zeros((1, embed_dim), jnp.float32)

        # ---- first layer scratch (kaiming) weights, stored as (in, out) ----
        W_scratch = self.std_kaiming * jax.random.normal(
            ks[3], (num_features, embed_dim))
        b_first = jnp.zeros((embed_dim,), jnp.float32)

        # ---- hoisted, x-independent GNN weight generation (runs once) ------
        W_first_f32 = _run_gridless(
            functools.partial(gnn_weight_kernel,
                              alpha=self.alpha,
                              std_kaiming=self.std_kaiming),
            (num_features, embed_dim),
            AX, P, W_gcn1, b_gcn1, W_gcn2, b_gcn2, W_scratch)
        self.W_first_f32 = W_first_f32

        # ---- pack the whole DNN into 3 lane-padded VMEM-resident buffers ---
        n_rest = len(hidden_dims) + 1                          # hidden + head
        self._num_rest = n_rest

        wf = jnp.zeros((num_features, _LANE), jnp.float32)
        wf = wf.at[:, :embed_dim].set(W_first_f32)
        self.wf = wf.astype(jnp.bfloat16)                      # (nf, 128) bf16

        wrest = jnp.zeros((n_rest, _LANE, _LANE), jnp.float32)
        biases = jnp.zeros((n_rest + 1, 1, _LANE), jnp.float32)
        biases = biases.at[0, 0, :embed_dim].set(b_first)

        d_in = embed_dim
        rest_dims = list(hidden_dims) + [num_classes]
        for i, d_out in enumerate(rest_dims):
            w = jnp.sqrt(2.0 / d_in) * jax.random.normal(ks[4 + i], (d_in, d_out))
            wrest = wrest.at[i, :d_in, :d_out].set(w)
            # biases initialized to zero (row i+1 already zero)
            d_in = d_out
        self.wrest = wrest.astype(jnp.bfloat16)                # (n_rest,128,128)
        self.biases = biases                                   # (n_rest+1,1,128)

        # ---- jitted, batch-gridded forward ----------------------------------
        nf = num_features
        ncls = num_classes

        def _forward(x):
            b = x.shape[0]
            tb = min(self.tile_b, _ceil_to(b, 8))              # cap tile at 128
            padded_b = _ceil_to(b, tb)
            if padded_b != b:
                x = jnp.pad(x, ((0, padded_b - b), (0, 0)))
            grid = (padded_b // tb,)

            out = pl.pallas_call(
                functools.partial(fused_mlp_kernel, num_rest=n_rest),
                grid_spec=pltpu.PrefetchScalarGridSpec(
                    num_scalar_prefetch=0,
                    grid=grid,
                    in_specs=[
                        # streamed per grid step (double-buffered by Pallas)
                        pl.BlockSpec((tb, nf), lambda i: (i, 0)),
                        # parameters: constant index_map -> VMEM-resident
                        pl.BlockSpec((nf, _LANE), lambda i: (0, 0)),
                        pl.BlockSpec((n_rest, _LANE, _LANE),
                                     lambda i: (0, 0, 0)),
                        pl.BlockSpec((n_rest + 1, 1, _LANE),
                                     lambda i: (0, 0, 0)),
                    ],
                    out_specs=pl.BlockSpec((tb, _LANE), lambda i: (i, 0)),
                ),
                out_shape=jax.ShapeDtypeStruct((padded_b, _LANE), jnp.float32),
                compiler_params=pltpu.CompilerParams(
                    dimension_semantics=("parallel",),
                    vmem_limit_bytes=16 * 1024 * 1024),
            )(x, self.wf, self.wrest, self.biases)

            # lane-dense slab -> real logits (cheap wrapper-side slice)
            return out[:b, :ncls]

        self._forward = jax.jit(_forward)

    def __call__(self, x):
        return self._forward(x)


# ---------------------------------------------------------------------------

if __name__ == "__main__":
    key = jax.random.PRNGKey(0)
    k_model, k_x = jax.random.split(key)

    batch, num_features = 8, 16
    model = GCondNetPallas(k_model, num_features=num_features)

    x = jax.random.normal(k_x, (batch, num_features), jnp.float32)

    logits = model(x)
    logits = jax.block_until_ready(logits)

    assert logits.shape == (batch, 2)
    assert bool(jnp.all(jnp.isfinite(logits)))
    print("KERNEL_OK")
</pallas_src>

<mosaic_0001>
module attributes {stable_mosaic.version = 11 : i64} {
  func.func @gnn_weight_kernel(%arg0: memref<128x4xf32, #tpu.memory_space<vmem>>, %arg1: memref<16x128xf32, #tpu.memory_space<vmem>>, %arg2: memref<4x64xf32, #tpu.memory_space<vmem>>, %arg3: memref<1x64xf32, #tpu.memory_space<vmem>>, %arg4: memref<64x32xf32, #tpu.memory_space<vmem>>, %arg5: memref<1x32xf32, #tpu.memory_space<vmem>>, %arg6: memref<16x32xf32, #tpu.memory_space<vmem>>, %arg7: memref<16x32xf32, #tpu.memory_space<vmem>>) attributes {dimension_semantics = [], scalar_prefetch = 0 : i64, scratch_operands = 0 : i64, tpu.core_type = #tpu.core_type<tc>} {
    %c0 = arith.constant 0 : index
    %c0_0 = arith.constant 0 : index
    %0 = vector.load %arg0[%c0, %c0_0] : memref<128x4xf32, #tpu.memory_space<vmem>>, vector<128x4xf32>
    %c0_1 = arith.constant 0 : index
    %c0_2 = arith.constant 0 : index
    %1 = vector.load %arg2[%c0_1, %c0_2] : memref<4x64xf32, #tpu.memory_space<vmem>>, vector<4x64xf32>
    %cst = arith.constant dense<0.000000e+00> : vector<128x64xf32>
    %2 = tpu.matmul %0, %1, %cst {dimension_numbers = #tpu.dot_dimension_numbers<[1], [0], [0], [1], [0, 0, 1, 1], [], []>} : vector<128x4xf32>, vector<4x64xf32>, vector<128x64xf32> -> vector<128x64xf32>
    %c0_3 = arith.constant 0 : index
    %c0_4 = arith.constant 0 : index
    %3 = vector.load %arg3[%c0_3, %c0_4] : memref<1x64xf32, #tpu.memory_space<vmem>>, vector<1x64xf32>
    %4 = vector.broadcast %3 : vector<1x64xf32> to vector<128x64xf32>
    %5 = arith.addf %2, %4 : vector<128x64xf32>
    %cst_5 = arith.constant 0.000000e+00 : f32
    %6 = vector.broadcast %cst_5 : f32 to vector<128x64xf32>
    %7 = arith.maximumf %5, %6 : vector<128x64xf32>
    %c0_6 = arith.constant 0 : index
    %c0_7 = arith.constant 0 : index
    %8 = vector.load %arg1[%c0_6, %c0_7] : memref<16x128xf32, #tpu.memory_space<vmem>>, vector<16x128xf32>
    %cst_8 = arith.constant dense<0.000000e+00> : vector<16x64xf32>
    %9 = tpu.matmul %8, %7, %cst_8 {dimension_numbers = #tpu.dot_dimension_numbers<[1], [0], [0], [1], [0, 0, 1, 1], [], []>} : vector<16x128xf32>, vector<128x64xf32>, vector<16x64xf32> -> vector<16x64xf32>
    %c0_9 = arith.constant 0 : index
    %c0_10 = arith.constant 0 : index
    %10 = vector.load %arg4[%c0_9, %c0_10] : memref<64x32xf32, #tpu.memory_space<vmem>>, vector<64x32xf32>
    %cst_11 = arith.constant dense<0.000000e+00> : vector<16x32xf32>
    %11 = tpu.matmul %9, %10, %cst_11 {dimension_numbers = #tpu.dot_dimension_numbers<[1], [0], [0], [1], [0, 0, 1, 1], [], []>} : vector<16x64xf32>, vector<64x32xf32>, vector<16x32xf32> -> vector<16x32xf32>
    %c0_12 = arith.constant 0 : index
    %c0_13 = arith.constant 0 : index
    %12 = vector.load %arg5[%c0_12, %c0_13] : memref<1x32xf32, #tpu.memory_space<vmem>>, vector<1x32xf32>
    %13 = vector.broadcast %12 : vector<1x32xf32> to vector<16x32xf32>
    %14 = arith.addf %11, %13 : vector<16x32xf32>
    %15 = vector.shape_cast %14 : vector<16x32xf32> to vector<1x16x32xf32>
    %cst_14 = arith.constant dense<0.000000e+00> : vector<1xf32>
    %16 = vector.multi_reduction <add>, %15, %cst_14 [1, 2] : vector<1x16x32xf32> to vector<1xf32>
    %17 = vector.shape_cast %16 : vector<1xf32> to vector<1x1x1xf32>
    %18 = vector.extract %17[0, 0, 0] : f32 from vector<1x1x1xf32>
    %cst_15 = arith.constant 5.120000e+02 : f32
    %19 = arith.divf %18, %cst_15 : f32
    %20 = vector.broadcast %19 : f32 to vector<16x32xf32>
    %21 = arith.subf %14, %20 : vector<16x32xf32>
    %22 = arith.mulf %21, %21 : vector<16x32xf32>
    %23 = vector.shape_cast %22 : vector<16x32xf32> to vector<1x16x32xf32>
    %cst_16 = arith.constant dense<0.000000e+00> : vector<1xf32>
    %24 = vector.multi_reduction <add>, %23, %cst_16 [1, 2] : vector<1x16x32xf32> to vector<1xf32>
    %25 = vector.shape_cast %24 : vector<1xf32> to vector<1x1x1xf32>
    %26 = vector.extract %25[0, 0, 0] : f32 from vector<1x1x1xf32>
    %cst_17 = arith.constant 5.110000e+02 : f32
    %27 = arith.divf %26, %cst_17 : f32
    %28 = math.sqrt %27 : f32
    %cst_18 = arith.constant 9.99999993E-9 : f32
    %29 = arith.addf %28, %cst_18 : f32
    %cst_19 = arith.constant 0.353553385 : f32
    %30 = arith.divf %cst_19, %29 : f32
    %31 = vector.broadcast %30 : f32 to vector<16x32xf32>
    %32 = arith.mulf %14, %31 : vector<16x32xf32>
    %cst_20 = arith.constant 5.000000e-01 : f32
    %33 = vector.broadcast %cst_20 : f32 to vector<16x32xf32>
    %34 = arith.mulf %33, %32 : vector<16x32xf32>
    %c0_21 = arith.constant 0 : index
    %c0_22 = arith.constant 0 : index
    %35 = vector.load %arg6[%c0_21, %c0_22] : memref<16x32xf32, #tpu.memory_space<vmem>>, vector<16x32xf32>
    %cst_23 = arith.constant 5.000000e-01 : f32
    %36 = vector.broadcast %cst_23 : f32 to vector<16x32xf32>
    %37 = arith.mulf %36, %35 : vector<16x32xf32>
    %38 = arith.addf %34, %37 : vector<16x32xf32>
    %c0_24 = arith.constant 0 : index
    %c0_25 = arith.constant 0 : index
    %39 = vector.load %arg7[%c0_24, %c0_25] : memref<16x32xf32, #tpu.memory_space<vmem>>, vector<16x32xf32>
    tpu.vector_store %arg7[%c0_24, %c0_25], %38 {strides = array<i32>} : memref<16x32xf32, #tpu.memory_space<vmem>>, vector<16x32xf32>,
    return
  }
}

</mosaic_0001>

<llo_original>
// kernel: tpu_custom_call.1
$region0: #{tpu_custom_call.1}
  #allocation0 [shape = 'u32[]', space=smem, size = 0x4, offset = 0x4, fixed_abs, tag = 'smem constant byte address 0x4 - core index']
  #allocation1 [shape = 'u32[144,128]{1,0:T(1,128)}', space=vmem, size = 0x12000, scoped, tag = 'internal scratch']
  %s0 = inlined_call_operand.vmem [shape: f32[128,4], index: 0, kind: input, shape index: {}]
  %s1 = inlined_call_operand.vmem [shape: f32[16,128], index: 1, kind: input, shape index: {}]
  %s2 = inlined_call_operand.vmem [shape: f32[4,64], index: 2, kind: input, shape index: {}]
  %s3 = inlined_call_operand.vmem [shape: f32[1,64], index: 3, kind: input, shape index: {}]
  %s4 = inlined_call_operand.vmem [shape: f32[64,32], index: 4, kind: input, shape index: {}]
  %s5 = inlined_call_operand.vmem [shape: f32[1,32], index: 5, kind: input, shape index: {}]
  %s6 = inlined_call_operand.vmem [shape: f32[16,32], index: 6, kind: input, shape index: {}]
  %s7 = inlined_call_operand.hbm [shape: f32[16,32], index: 7, kind: output, shape index: {}]
  %s8 = sld [smem:[#allocation0]]
  $region38: #{tpu_custom_call.1} parent=0
    _
  %s10 = ssub.s32 1, %s8
  %s11 = scalar_select 0, %s10, %s8
  $region1: #{tpu_custom_call.1} parent=0
    #allocation2 [shape = 'u8[8192]{0}', space=vmem, size = 0x2000, scoped, tag = 'output window, operand 0, single buffered']
    #allocation3 [shape = 's32[1]{0}', space=sflag, size = 0x4, scoped, tag = 'scoped memory for tpu_custom_call.1']
    %12 = vsyncpa [#allocation3], 0
    // Predicated region
    $region2: #{tpu_custom_call.1} parent=1 // pred_check
      _
    $region3: #{tpu_custom_call.1} parent=1 // pred_check_branch
      %14 = sbr.rel (0) target = $region5
    $region4: #{tpu_custom_call.1} parent=1 // pred_region
      _
    $region5: #{tpu_custom_call.1} parent=1 // pred_fallthru
      _
    // Predicated region
    $region6: #{tpu_custom_call.1} parent=1 // pred_check
      _
    $region7: #{tpu_custom_call.1} parent=1 // pred_check_branch
      %16 = sbr.rel (0) target = $region9
    $region8: #{tpu_custom_call.1} parent=1 // pred_region
      _
    $region9: #{tpu_custom_call.1} parent=1 // pred_fallthru
      _
    // Predicated region
    $region10: #{tpu_custom_call.1} parent=1 // pred_check
      _
    $region11: #{tpu_custom_call.1} parent=1 // pred_check_branch
      %18 = sbr.rel (0) target = $region13
    $region12: #{tpu_custom_call.1} parent=1 // pred_region
      _
    $region13: #{tpu_custom_call.1} parent=1 // pred_fallthru
      _
    // Predicated region
    $region14: #{tpu_custom_call.1} parent=1 // pred_check
      _
    $region15: #{tpu_custom_call.1} parent=1 // pred_check_branch
      %20 = sbr.rel (0) target = $region17
    $region16: #{tpu_custom_call.1} parent=1 // pred_region
      _
    $region17: #{tpu_custom_call.1} parent=1 // pred_fallthru
      _
    // Predicated region
    $region18: #{tpu_custom_call.1} parent=1 // pred_check
      _
    $region19: #{tpu_custom_call.1} parent=1 // pred_check_branch
      %22 = sbr.rel (0) target = $region21
    $region20: #{tpu_custom_call.1} parent=1 // pred_region
      _
    $region21: #{tpu_custom_call.1} parent=1 // pred_fallthru
      _
    // Predicated region
    $region22: #{tpu_custom_call.1} parent=1 // pred_check
      _
    $region23: #{tpu_custom_call.1} parent=1 // pred_check_branch
      %24 = sbr.rel (0) target = $region25
    $region24: #{tpu_custom_call.1} parent=1 // pred_region
      _
    $region25: #{tpu_custom_call.1} parent=1 // pred_fallthru
      _
    // Predicated region
    $region26: #{tpu_custom_call.1} parent=1 // pred_check
      _
    $region27: #{tpu_custom_call.1} parent=1 // pred_check_branch
      %26 = sbr.rel (0) target = $region29
    $region28: #{tpu_custom_call.1} parent=1 // pred_region
      _
    $region29: #{tpu_custom_call.1} parent=1 // pred_fallthru
      _
    %v27 = vld [vmem:[%s0] sm:$0xff]
    %v28 = vld [vmem:[%s0 + $0x8] sm:$0xff]
    %v29 = vld [vmem:[%s0 + $0x10] sm:$0xff]
    %v30 = vld [vmem:[%s0 + $0x18] sm:$0xff]
    %v31 = vld [vmem:[%s0 + $0x20] sm:$0xff]
    %v32 = vld [vmem:[%s0 + $0x28] sm:$0xff]
    %v33 = vld [vmem:[%s0 + $0x30] sm:$0xff]
    %v34 = vld [vmem:[%s0 + $0x38] sm:$0xff]
    %v35 = vld [vmem:[%s0 + $0x40] sm:$0xff]
    %v36 = vld [vmem:[%s0 + $0x48] sm:$0xff]
    %v37 = vld [vmem:[%s0 + $0x50] sm:$0xff]
    %v38 = vld [vmem:[%s0 + $0x58] sm:$0xff]
    %v39 = vld [vmem:[%s0 + $0x60] sm:$0xff]
    %v40 = vld [vmem:[%s0 + $0x68] sm:$0xff]
    %v41 = vld [vmem:[%s0 + $0x70] sm:$0xff]
    %v42 = vld [vmem:[%s0 + $0x78] sm:$0xff]
    %v43 = vld [vmem:[%s2] sm:$0xf]
    %v44 = vld [vmem:[%s3] sm:$0x1]
    %v46 = vlaneseq
    %v47 = vshrl.u32 %v46, 7
    %v48 = vsub.s32 0, %v47
    %v49 = vrot.slane %v44, %v48
    %vm51 = vcmask 31744
    %v53 = vsel %vm51, %v27, 0
    %v56 = vsel %vm51, %v28, 0
    %v59 = vsel %vm51, %v29, 0
    %v62 = vsel %vm51, %v30, 0
    %v65 = vsel %vm51, %v31, 0
    %v68 = vsel %vm51, %v32, 0
    %v71 = vsel %vm51, %v33, 0
    %v74 = vsel %vm51, %v34, 0
    %v77 = vsel %vm51, %v35, 0
    %v80 = vsel %vm51, %v36, 0
    %v83 = vsel %vm51, %v37, 0
    %v86 = vsel %vm51, %v38, 0
    %v89 = vsel %vm51, %v39, 0
    %v92 = vsel %vm51, %v40, 0
    %v95 = vsel %vm51, %v41, 0
    %v98 = vsel %vm51, %v42, 0
    %vm100 = vcmask 1043456
    %v102 = vsel %vm100, %v43, 0
    %104 = vmatprep.subr.mxu0 0.0
    %105 = vmatpush1.msra.mxu0 %v102
    %106 = vmatprep.subr.mxu0 0.0
    %107 = vmatpush1.msra.mxu0 0.0
    %108 = vmatprep.subr.mxu0 0.0
    %109 = vmatpush1.msra.mxu0 0.0
    %110 = vmatprep.subr.mxu0 0.0
    %111 = vmatpush1.msra.mxu0 0.0
    %112 = vmatprep.subr.mxu0 0.0
    %113 = vmatpush1.msra.mxu0 0.0
    %114 = vmatprep.subr.mxu0 0.0
    %115 = vmatpush1.msra.mxu0 0.0
    %116 = vmatprep.subr.mxu0 0.0
    %117 = vmatpush1.msra.mxu0 0.0
    %118 = vmatprep.subr.mxu0 0.0
    %119 = vmatpush1.msra.mxu0 0.0
    %120 = vmatprep.subr.mxu0 0.0
    %121 = vmatpush1.msra.mxu0 0.0
    %122 = vmatprep.subr.mxu0 0.0
    %123 = vmatpush1.msra.mxu0 0.0
    %124 = vmatprep.subr.mxu0 0.0
    %125 = vmatpush1.msra.mxu0 0.0
    %126 = vmatprep.subr.mxu0 0.0
    %127 = vmatpush1.msra.mxu0 0.0
    %128 = vmatprep.subr.mxu0 0.0
    %129 = vmatpush1.msra.mxu0 0.0
    %130 = vmatprep.subr.mxu0 0.0
    %131 = vmatpush1.msra.mxu0 0.0
    %132 = vmatprep.subr.mxu0 0.0
    %133 = vmatpush1.msra.mxu0 0.0
    %134 = vmatprep.subr.mxu0 0.0
    %135 = vmatpush1.msra.mxu0 0.0
    %136 = vmatprep.subr.mxu0 0.0
    %137 = vmatpush1.msra.mxu0 0.0
    %138 = vmatprep.subr.mxu0 0.0
    %139 = vmatpush1.msra.mxu0 0.0
    %140 = vmatprep.subr.mxu0 0.0
    %141 = vmatpush1.msra.mxu0 0.0
    %142 = vmatprep.subr.mxu0 0.0
    %143 = vmatpush1.msra.mxu0 0.0
    %144 = vmatprep.subr.mxu0 0.0
    %145 = vmatpush1.msra.mxu0 0.0
    %146 = vmatprep.subr.mxu0 0.0
    %147 = vmatpush1.msra.mxu0 0.0
    %148 = vmatprep.subr.mxu0 0.0
    %149 = vmatpush1.msra.mxu0 0.0
    %150 = vmatprep.subr.mxu0 0.0
    %151 = vmatpush1.msra.mxu0 0.0
    %152 = vmatprep.subr.mxu0 0.0
    %153 = vmatpush1.msra.mxu0 0.0
    %154 = vmatprep.subr.mxu0 0.0
    %155 = vmatpush1.msra.mxu0 0.0
    %156 = vmatprep.subr.mxu0 0.0
    %157 = vmatpush1.msra.mxu0 0.0
    %158 = vmatprep.subr.mxu0 0.0
    %159 = vmatpush1.msra.mxu0 0.0
    %160 = vmatprep.subr.mxu0 0.0
    %161 = vmatpush1.msra.mxu0 0.0
    %162 = vmatprep.subr.mxu0 0.0
    %163 = vmatpush1.msra.mxu0 0.0
    %164 = vmatprep.subr.mxu0 0.0
    %165 = vmatpush1.msra.mxu0 0.0
    %166 = vmatprep.subr.mxu0 0.0
    %167 = vmatpush1.msra.mxu0 0.0
    %168 = vmatprep.mubr.f32.mxu0 0.0
    %169 = vmatmul.mubr.f32.gmra.mrb[0].mxu0 %v53
    %v170 = vpop.f32.mrb[0].mxu0
    %v171 = vadd.f32 %v49, %v170
    %v172 = vpop.f32.mrb[0].mxu0
    %173 = vmatprep.mubr.f32.mxu0 0.0
    %174 = vmatmul.mubr.f32.gmra.mrb[0].mxu0 %v56
    %v175 = vpop.f32.mrb[0].mxu0
    %v176 = vadd.f32 %v49, %v175
    %v177 = vpop.f32.mrb[0].mxu0
    %178 = vmatprep.mubr.f32.mxu0 0.0
    %179 = vmatmul.mubr.f32.gmra.mrb[0].mxu0 %v59
    %v180 = vpop.f32.mrb[0].mxu0
    %v181 = vadd.f32 %v49, %v180
    %v182 = vpop.f32.mrb[0].mxu0
    %183 = vmatprep.mubr.f32.mxu0 0.0
    %184 = vmatmul.mubr.f32.gmra.mrb[0].mxu0 %v62
    %v185 = vpop.f32.mrb[0].mxu0
    %v186 = vadd.f32 %v49, %v185
    %v187 = vpop.f32.mrb[0].mxu0
    %188 = vmatprep.mubr.f32.mxu0 0.0
    %189 = vmatmul.mubr.f32.gmra.mrb[0].mxu0 %v65
    %v190 = vpop.f32.mrb[0].mxu0
    %v191 = vadd.f32 %v49, %v190
    %v192 = vpop.f32.mrb[0].mxu0
    %193 = vmatprep.mubr.f32.mxu0 0.0
    %194 = vmatmul.mubr.f32.gmra.mrb[0].mxu0 %v68
    %v195 = vpop.f32.mrb[0].mxu0
    %v196 = vadd.f32 %v49, %v195
    %v197 = vpop.f32.mrb[0].mxu0
    %198 = vmatprep.mubr.f32.mxu0 0.0
    %199 = vmatmul.mubr.f32.gmra.mrb[0].mxu0 %v71
    %v200 = vpop.f32.mrb[0].mxu0
    %v201 = vadd.f32 %v49, %v200
    %v202 = vpop.f32.mrb[0].mxu0
    %203 = vmatprep.mubr.f32.mxu0 0.0
    %204 = vmatmul.mubr.f32.gmra.mrb[0].mxu0 %v74
    %v205 = vpop.f32.mrb[0].mxu0
    %v206 = vadd.f32 %v49, %v205
    %v207 = vpop.f32.mrb[0].mxu0
    %208 = vmatprep.mubr.f32.mxu0 0.0
    %209 = vmatmul.mubr.f32.gmra.mrb[0].mxu0 %v77
    %v210 = vpop.f32.mrb[0].mxu0
    %v211 = vadd.f32 %v49, %v210
    %v212 = vpop.f32.mrb[0].mxu0
    %213 = vmatprep.mubr.f32.mxu0 0.0
    %214 = vmatmul.mubr.f32.gmra.mrb[0].mxu0 %v80
    %v215 = vpop.f32.mrb[0].mxu0
    %v216 = vadd.f32 %v49, %v215
    %v217 = vpop.f32.mrb[0].mxu0
    %218 = vmatprep.mubr.f32.mxu0 0.0
    %219 = vmatmul.mubr.f32.gmra.mrb[0].mxu0 %v83
    %v220 = vpop.f32.mrb[0].mxu0
    %v221 = vadd.f32 %v49, %v220
    %v222 = vpop.f32.mrb[0].mxu0
    %223 = vmatprep.mubr.f32.mxu0 0.0
    %224 = vmatmul.mubr.f32.gmra.mrb[0].mxu0 %v86
    %v225 = vpop.f32.mrb[0].mxu0
    %v226 = vadd.f32 %v49, %v225
    %v227 = vpop.f32.mrb[0].mxu0
    %228 = vmatprep.mubr.f32.mxu0 0.0
    %229 = vmatmul.mubr.f32.gmra.mrb[0].mxu0 %v89
    %v230 = vpop.f32.mrb[0].mxu0
    %v231 = vadd.f32 %v49, %v230
    %v232 = vpop.f32.mrb[0].mxu0
    %233 = vmatprep.mubr.f32.mxu0 0.0
    %234 = vmatmul.mubr.f32.gmra.mrb[0].mxu0 %v92
    %v235 = vpop.f32.mrb[0].mxu0
    %v236 = vadd.f32 %v49, %v235
    %v237 = vpop.f32.mrb[0].mxu0
    %238 = vmatprep.mubr.f32.mxu0 0.0
    %239 = vmatmul.mubr.f32.gmra.mrb[0].mxu0 %v95
    %v240 = vpop.f32.mrb[0].mxu0
    %v241 = vadd.f32 %v49, %v240
    %v242 = vpop.f32.mrb[0].mxu0
    %243 = vmatprep.mubr.f32.mxu0 0.0
    %244 = vmatmul.mubr.f32.gmra.mrb[0].mxu0 %v98
    %v245 = vpop.f32.mrb[0].mxu0
    %v246 = vadd.f32 %v49, %v245
    %v247 = vpop.f32.mrb[0].mxu0
    %248 = vdwg.mxu0
    %v249 = vmax.f32 %v171, 0.0
    %v250 = vmax.f32 %v176, 0.0
    %v251 = vmax.f32 %v181, 0.0
    %v252 = vmax.f32 %v186, 0.0
    %v253 = vmax.f32 %v191, 0.0
    %v254 = vmax.f32 %v196, 0.0
    %v255 = vmax.f32 %v201, 0.0
    %v256 = vmax.f32 %v206, 0.0
    %v257 = vmax.f32 %v211, 0.0
    %v258 = vmax.f32 %v216, 0.0
    %v259 = vmax.f32 %v221, 0.0
    %v260 = vmax.f32 %v226, 0.0
    %v261 = vmax.f32 %v231, 0.0
    %v262 = vmax.f32 %v236, 0.0
    %v263 = vmax.f32 %v241, 0.0
    %v264 = vmax.f32 %v246, 0.0
    %v265 = vld [vmem:[%s1] sm:$0xff]
    %v266 = vld [vmem:[%s1 + $0x8] sm:$0xff]
    %267 = vmatprep.subr.mxu0 0.0
    %268 = vmatpush1.msra.mxu0 %v249
    %269 = vmatprep.subr.mxu0 0.0
    %270 = vmatpush1.msra.mxu0 %v250
    %271 = vmatprep.subr.mxu0 0.0
    %272 = vmatpush1.msra.mxu0 %v251
    %273 = vmatprep.subr.mxu0 0.0
    %274 = vmatpush1.msra.mxu0 %v252
    %275 = vmatprep.subr.mxu0 0.0
    %276 = vmatpush1.msra.mxu0 %v253
    %277 = vmatprep.subr.mxu0 0.0
    %278 = vmatpush1.msra.mxu0 %v254
    %279 = vmatprep.subr.mxu0 0.0
    %280 = vmatpush1.msra.mxu0 %v255
    %281 = vmatprep.subr.mxu0 0.0
    %282 = vmatpush1.msra.mxu0 %v256
    %283 = vmatprep.subr.mxu0 0.0
    %284 = vmatpush1.msra.mxu0 %v257
    %285 = vmatprep.subr.mxu0 0.0
    %286 = vmatpush1.msra.mxu0 %v258
    %287 = vmatprep.subr.mxu0 0.0
    %288 = vmatpush1.msra.mxu0 %v259
    %289 = vmatprep.subr.mxu0 0.0
    %290 = vmatpush1.msra.mxu0 %v260
    %291 = vmatprep.subr.mxu0 0.0
    %292 = vmatpush1.msra.mxu0 %v261
    %293 = vmatprep.subr.mxu0 0.0
    %294 = vmatpush1.msra.mxu0 %v262
    %295 = vmatprep.subr.mxu0 0.0
    %296 = vmatpush1.msra.mxu0 %v263
    %297 = vmatprep.subr.mxu0 0.0
    %298 = vmatpush1.msra.mxu0 %v264
    %299 = vmatprep.subr.mxu0 0.0
    %300 = vmatpush1.msra.mxu0 0.0
    %301 = vmatprep.subr.mxu0 0.0
    %302 = vmatpush1.msra.mxu0 0.0
    %303 = vmatprep.subr.mxu0 0.0
    %304 = vmatpush1.msra.mxu0 0.0
    %305 = vmatprep.subr.mxu0 0.0
    %306 = vmatpush1.msra.mxu0 0.0
    %307 = vmatprep.subr.mxu0 0.0
    %308 = vmatpush1.msra.mxu0 0.0
    %309 = vmatprep.subr.mxu0 0.0
    %310 = vmatpush1.msra.mxu0 0.0
    %311 = vmatprep.subr.mxu0 0.0
    %312 = vmatpush1.msra.mxu0 0.0
    %313 = vmatprep.subr.mxu0 0.0
    %314 = vmatpush1.msra.mxu0 0.0
    %315 = vmatprep.subr.mxu0 0.0
    %316 = vmatpush1.msra.mxu0 0.0
    %317 = vmatprep.subr.mxu0 0.0
    %318 = vmatpush1.msra.mxu0 0.0
    %319 = vmatprep.subr.mxu0 0.0
    %320 = vmatpush1.msra.mxu0 0.0
    %321 = vmatprep.subr.mxu0 0.0
    %322 = vmatpush1.msra.mxu0 0.0
    %323 = vmatprep.subr.mxu0 0.0
    %324 = vmatpush1.msra.mxu0 0.0
    %325 = vmatprep.subr.mxu0 0.0
    %326 = vmatpush1.msra.mxu0 0.0
    %327 = vmatprep.subr.mxu0 0.0
    %328 = vmatpush1.msra.mxu0 0.0
    %329 = vmatprep.subr.mxu0 0.0
    %330 = vmatpush1.msra.mxu0 0.0
    %331 = vmatprep.mubr.f32.mxu0 0.0
    %332 = vmatmul.mubr.f32.gmra.mrb[0].mxu0 %v265
    %v333 = vpop.f32.mrb[0].mxu0
    %v334 = vadd.f32 0.0, %v333
    %v335 = vpop.f32.mrb[0].mxu0
    %336 = vmatprep.mubr.f32.mxu0 0.0
    %337 = vmatmul.mubr.f32.gmra.mrb[0].mxu0 %v266
    %v338 = vpop.f32.mrb[0].mxu0
    %v339 = vadd.f32 0.0, %v338
    %v340 = vpop.f32.mrb[0].mxu0
    %341 = vdwg.mxu0
    %v342 = vld [vmem:[%s4] sm:$0xff]
    %v343 = vld [vmem:[%s4 + $0x8] sm:$0xff]
    %v344 = vld [vmem:[%s4 + $0x10] sm:$0xff]
    %v345 = vld [vmem:[%s4 + $0x18] sm:$0xff]
    %v346 = vld [vmem:[%s4 + $0x20] sm:$0xff]
    %v347 = vld [vmem:[%s4 + $0x28] sm:$0xff]
    %v348 = vld [vmem:[%s4 + $0x30] sm:$0xff]
    %v349 = vld [vmem:[%s4 + $0x38] sm:$0xff]
    %v350 = vld [vmem:[%s5] sm:$0x1]
    %v352 = vlaneseq
    %v353 = vshrl.u32 %v352, 7
    %v354 = vsub.s32 0, %v353
    %v355 = vrot.slane %v350, %v354
    %vm357 = vcmask 523264
    %v359 = vsel %vm357, %v334, 0
    %v362 = vsel %vm357, %v339, 0
    %364 = vmatprep.subr.mxu0 0.0
    %365 = vmatpush1.msra.mxu0 %v342
    %366 = vmatprep.subr.mxu0 0.0
    %367 = vmatpush1.msra.mxu0 %v343
    %368 = vmatprep.subr.mxu0 0.0
    %369 = vmatpush1.msra.mxu0 %v344
    %370 = vmatprep.subr.mxu0 0.0
    %371 = vmatpush1.msra.mxu0 %v345
    %372 = vmatprep.subr.mxu0 0.0
    %373 = vmatpush1.msra.mxu0 %v346
    %374 = vmatprep.subr.mxu0 0.0
    %375 = vmatpush1.msra.mxu0 %v347
    %376 = vmatprep.subr.mxu0 0.0
    %377 = vmatpush1.msra.mxu0 %v348
    %378 = vmatprep.subr.mxu0 0.0
    %379 = vmatpush1.msra.mxu0 %v349
    %380 = vmatprep.subr.mxu0 0.0
    %381 = vmatpush1.msra.mxu0 0.0
    %382 = vmatprep.subr.mxu0 0.0
    %383 = vmatpush1.msra.mxu0 0.0
    %384 = vmatprep.subr.mxu0 0.0
    %385 = vmatpush1.msra.mxu0 0.0
    %386 = vmatprep.subr.mxu0 0.0
    %387 = vmatpush1.msra.mxu0 0.0
    %388 = vmatprep.subr.mxu0 0.0
    %389 = vmatpush1.msra.mxu0 0.0
    %390 = vmatprep.subr.mxu0 0.0
    %391 = vmatpush1.msra.mxu0 0.0
    %392 = vmatprep.subr.mxu0 0.0
    %393 = vmatpush1.msra.mxu0 0.0
    %394 = vmatprep.subr.mxu0 0.0
    %395 = vmatpush1.msra.mxu0 0.0
    %396 = vmatprep.subr.mxu0 0.0
    %397 = vmatpush1.msra.mxu0 0.0
    %398 = vmatprep.subr.mxu0 0.0
    %399 = vmatpush1.msra.mxu0 0.0
    %400 = vmatprep.subr.mxu0 0.0
    %401 = vmatpush1.msra.mxu0 0.0
    %402 = vmatprep.subr.mxu0 0.0
    %403 = vmatpush1.msra.mxu0 0.0
    %404 = vmatprep.subr.mxu0 0.0
    %405 = vmatpush1.msra.mxu0 0.0
    %406 = vmatprep.subr.mxu0 0.0
    %407 = vmatpush1.msra.mxu0 0.0
    %408 = vmatprep.subr.mxu0 0.0
    %409 = vmatpush1.msra.mxu0 0.0
    %410 = vmatprep.subr.mxu0 0.0
    %411 = vmatpush1.msra.mxu0 0.0
    %412 = vmatprep.subr.mxu0 0.0
    %413 = vmatpush1.msra.mxu0 0.0
    %414 = vmatprep.subr.mxu0 0.0
    %415 = vmatpush1.msra.mxu0 0.0
    %416 = vmatprep.subr.mxu0 0.0
    %417 = vmatpush1.msra.mxu0 0.0
    %418 = vmatprep.subr.mxu0 0.0
    %419 = vmatpush1.msra.mxu0 0.0
    %420 = vmatprep.subr.mxu0 0.0
    %421 = vmatpush1.msra.mxu0 0.0
    %422 = vmatprep.subr.mxu0 0.0
    %423 = vmatpush1.msra.mxu0 0.0
    %424 = vmatprep.subr.mxu0 0.0
    %425 = vmatpush1.msra.mxu0 0.0
    %426 = vmatprep.subr.mxu0 0.0
    %427 = vmatpush1.msra.mxu0 0.0
    %428 = vmatprep.mubr.f32.mxu0 0.0
    %429 = vmatmul.mubr.f32.gmra.mrb[0].mxu0 %v359
    %v430 = vpop.f32.mrb[0].mxu0
    %v431 = vadd.f32 %v355, %v430
    %v432 = vpop.f32.mrb[0].mxu0
    %433 = vmatprep.mubr.f32.mxu0 0.0
    %434 = vmatmul.mubr.f32.gmra.mrb[0].mxu0 %v362
    %v435 = vpop.f32.mrb[0].mxu0
    %v436 = vadd.f32 %v355, %v435
    %v437 = vpop.f32.mrb[0].mxu0
    %438 = vdwg.mxu0
    %vm439 = vcmask 261120
    %v440 = vsel %vm439, %v431, 0.0
    %v441 = vsel %vm439, %v436, 0.0
    %v442 = vadd.f32 %v440, %v441
    %443 = vadd.xlane.f32.xlu0 %v442
    %v444 = vpop.xlane.xlu0 %443
    %v445 = vrot.slane %v444, 4
    %v446 = vadd.f32 %v444, %v445
    %v447 = vrot.slane %v446, 2
    %v448 = vadd.f32 %v446, %v447
    %v449 = vrot.slane %v448, 1
    %v450 = vadd.f32 %v448, %v449
    %s451 = vtos %v450
    %v452 = vrcp.pop 512.0
    %s453 = vtos %v452
    %s454 = smul.f32 %s451, %s453
    %v455 = vstv %s454
    %v456 = vsub.f32 %v431, %v455
    %v457 = vsub.f32 %v436, %v455
    %v458 = vmul.f32 %v456, %v456
    %v459 = vmul.f32 %v457, %v457
    %v460 = vsel %vm439, %v458, 0.0
    %v461 = vsel %vm439, %v459, 0.0
    %v462 = vadd.f32 %v460, %v461
    %463 = vadd.xlane.f32.xlu0 %v462
    %v464 = vpop.xlane.xlu0 %463
    %v465 = vrot.slane %v464, 4
    %v466 = vadd.f32 %v464, %v465
    %v467 = vrot.slane %v466, 2
    %v468 = vadd.f32 %v466, %v467
    %v469 = vrot.slane %v468, 1
    %v470 = vadd.f32 %v468, %v469
    %s471 = vtos %v470
    %v472 = vrcp.pop 511.0
    %s473 = vtos %v472
    %s474 = smul.f32 %s471, %s473
    %v475 = vstv %s474
    %v476 = vrsqrt.pop %v475
    %v477 = vmul.f32 %v475, %v476
    %vm478 = vcmp.eq.f32.partialorder %v475, inf
    %v479 = vsel %vm478, %v475, %v477
    %vm480 = vcmp.eq.f32.partialorder %v475, 0.0
    %v481 = vand.u32 %v475, 2147483648
    %v482 = vsel %vm480, %v481, %v479
    %s483 = vtos %v482
    %s484 = sadd.f32 %s483, 1e-08
    %v485 = vstv %s484
    %v486 = vrcp.pop %v485
    %s487 = vtos %v486
    %s488 = smul.f32 0.35355338, %s487
    %v489 = vstv %s488
    %v490 = vmul.f32 %v431, %v489
    %v491 = vmul.f32 %v436, %v489
    %v492 = vmul.f32 %v490, 0.5
    %v493 = vmul.f32 %v491, 0.5
    %v494 = vld [vmem:[%s6] sm:$0xff]
    %v495 = vld [vmem:[%s6 + $0x8] sm:$0xff]
    %v496 = vmul.f32 %v494, 0.5
    %v497 = vmul.f32 %v495, 0.5
    %v498 = vadd.f32 %v492, %v496
    %v499 = vadd.f32 %v493, %v497
    %500 = vst.msk [vmem:[#allocation2] sm:$0xff] %vm439, %v498
    %501 = vst.msk [vmem:[#allocation2 + $0x8] sm:$0xff] %vm439, %v499
    // Predicated region
    $region30: #{tpu_custom_call.1} parent=1 // pred_check
      _
    $region31: #{tpu_custom_call.1} parent=1 // pred_check_branch
      %503 = sbr.rel (0) target = $region33
    $region32: #{tpu_custom_call.1} parent=1 // pred_region
      %s505 = ssub.s32 256, 256
      %506 = vsyncadd [#allocation3], %s505
      %s507 = sshll.u32 [#allocation2], 4
      %s508 = int_to_ptr.vmem [resolvable:$true] %s507
      %513 = dma.vmem_to_hbm [thread:$0]  %s508, 256, %s7, [#allocation3], 128, 128, 8
    $region33: #{tpu_custom_call.1} parent=1 // pred_fallthru
      _
    // Predicated region
    $region34: #{tpu_custom_call.1} parent=1 // pred_check
      _
    $region35: #{tpu_custom_call.1} parent=1 // pred_check_branch
      %515 = sbr.rel (0) target = $region37
    $region36: #{tpu_custom_call.1} parent=1 // pred_region
      %516 = dma.done [#allocation3], 256
    $region37: #{tpu_custom_call.1} parent=1 // pred_fallthru
      _
    %517 = vsyncpa [#allocation3], 1

</llo_original>
